<compile_context>
chip_gen: v7x
topology: tpu7x:2x2x1
jax: 0.10.0
libtpu: 0.0.40
codegen_flags: <defaults>
</compile_context>

<pallas_src>
import functools

import jax
import jax.numpy as jnp
from jax.experimental import pallas as pl
from jax.experimental.pallas import tpu as pltpu


_LANES = 128
_BLOCK_BYTES_DEFAULT = 2 * 1024 * 1024   # v5e / v6e: 2 MiB already amortizes step overhead
_BLOCK_BYTES_V7X = 4 * 1024 * 1024       # v7x: faster HBM -> bigger blocks
_VMEM_LIMIT_CAP = 32 * 1024 * 1024       # safe on every chip (v7x physical VMEM = 64 MiB)


def _sublane_granularity(dtype) -> int:
    itemsize = jnp.dtype(dtype).itemsize
    return {4: 8, 2: 16, 1: 32}.get(itemsize, 8)


def _round_up(a: int, b: int) -> int:
    return ((a + b - 1) // b) * b


@functools.lru_cache(maxsize=1)
def _device_profile():
    """Heuristic (is_v7x, is_v5e) from the default backend's device kind."""
    kind = ""
    try:
        kind = (jax.devices()[0].device_kind or "").lower()
    except Exception:
        pass
    is_v7x = "v7" in kind
    is_v5e = ("v5e" in kind) or ("v5 lite" in kind) or ("v5litepod" in kind)
    return is_v7x, is_v5e


# ---------------- kernels ----------------

def _heaviside_kernel(x_ref, o_ref):
    o_ref[...] = (x_ref[...] >= 0).astype(o_ref.dtype)


def _primitive_kernel_factory(w: float, c: float, compute_dtype):
    inv_2w = 1.0 / (2.0 * w)
    cw = c * w
    one_minus_cw = 1.0 - cw

    def _kernel(x_ref, o_ref):
        x = x_ref[...].astype(compute_dtype)
        mid = x * inv_2w + 0.5
        if c == 0.0:
            out = jnp.where(x < -w, 0.0, jnp.where(x > w, 1.0, mid))
        else:
            # cx computed once; |x| <= w keeps the middle branch inclusive at
            # x = +-w (matches the PyTorch reference).
            cx = c * x
            out = jnp.where(jnp.abs(x) <= w, mid,
                            cx + jnp.where(x > w, one_minus_cw, cw))
        o_ref[...] = out.astype(o_ref.dtype)

    return _kernel


# Plain-jnp path for the (< g*128 element) unaligned tail / degenerate tiny inputs.
def _forward_jnp(x, w, c, spiking):
    if spiking:
        return (x >= 0).astype(x.dtype)
    xf = x.astype(jnp.float32)
    mid = xf * (1.0 / (2.0 * w)) + 0.5
    if c == 0.0:
        out = jnp.where(xf < -w, 0.0, jnp.where(xf > w, 1.0, mid))
    else:
        cw = c * w
        out = jnp.where(jnp.abs(xf) <= w, mid,
                        c * xf + jnp.where(xf > w, 1.0 - cw, cw))
    return out.astype(x.dtype)


# ---------------- wrapper ----------------

def piecewise_leaky_relu_forward(x: jax.Array, w: float = 1.0, c: float = 0.01,
                                 spiking: bool = True,
                                 block_bytes: int | None = None) -> jax.Array:
    """Elementwise PiecewiseLeakyReLU forward on TPU via Pallas."""
    orig_shape = x.shape
    dtype = x.dtype
    n = x.size
    if n == 0:
        return x

    itemsize = jnp.dtype(dtype).itemsize
    g = _sublane_granularity(dtype)
    chunk = g * _LANES                       # smallest fully lane/sublane-aligned unit
    n_main = (n // chunk) * chunk            # kernel handles this aligned prefix
    n_tail = n - n_main                      # < g*128 elements, handled in plain jnp

    w = float(w)
    c = float(c)

    x_flat = jnp.ravel(x)

    if n_main == 0:
        # Smaller than one aligned chunk: a kernel launch is pure overhead.
        return _forward_jnp(x_flat, w, c, spiking).reshape(orig_shape)

    is_v7x, is_v5e = _device_profile()

    if block_bytes is None:
        block_bytes = _BLOCK_BYTES_V7X if is_v7x else _BLOCK_BYTES_DEFAULT

    rows = n_main // _LANES                  # multiple of g by construction
    target_rows = _round_up(max(g, block_bytes // (_LANES * itemsize)), g)
    tile_rows = min(rows, target_rows)       # no forced split on single-TC v5e/v6e
    grid_steps = pl.cdiv(rows, tile_rows)    # partial last block is masked by Pallas

    # v7x only: explicitly shard a multi-step grid across the 2 TensorCores.
    dim_sem = ("parallel",)
    if is_v7x and grid_steps >= 2 and grid_steps % 2 == 0:
        core_parallel = getattr(pltpu, "CORE_PARALLEL", None)
        if core_parallel is not None:
            dim_sem = (core_parallel,)

    if spiking:
        kernel = _heaviside_kernel
        flops_per_elem = 1
    else:
        # bf16/f16 compute natively where the VALU supports it (v6e/v7x);
        # keep the f32 upcast on v5e (no bf16 VALU) and for f32 inputs.
        if itemsize == 2 and not is_v5e:
            compute_dtype = dtype
        else:
            compute_dtype = jnp.float32
        kernel = _primitive_kernel_factory(w, c, compute_dtype)
        flops_per_elem = 5

    tile_bytes = tile_rows * _LANES * itemsize
    # double-buffered input + double-buffered output + compiler-scratch margin
    vmem_limit = min(4 * tile_bytes + (4 << 20), _VMEM_LIMIT_CAP)

    x_main = x_flat if n_main == n else x_flat[:n_main]
    x2d = x_main.reshape(rows, _LANES)

    out2d = pl.pallas_call(
        kernel,
        out_shape=jax.ShapeDtypeStruct((rows, _LANES), dtype),
        grid_spec=pltpu.PrefetchScalarGridSpec(
            num_scalar_prefetch=0,
            grid=(grid_steps,),
            in_specs=[pl.BlockSpec((tile_rows, _LANES), lambda i: (i, 0))],
            out_specs=pl.BlockSpec((tile_rows, _LANES), lambda i: (i, 0)),
        ),
        compiler_params=pltpu.CompilerParams(
            dimension_semantics=dim_sem,
            vmem_limit_bytes=vmem_limit,
            allow_input_fusion=[True],   # let XLA fuse the producer into the input DMA
        ),
        cost_estimate=pl.CostEstimate(
            flops=flops_per_elem * n_main,
            transcendentals=0,
            bytes_accessed=2 * n_main * itemsize,
        ),
    )(x2d)

    out_main = out2d.reshape(n_main)
    if n_tail:
        out_tail = _forward_jnp(x_flat[n_main:], w, c, spiking)
        out_flat = jnp.concatenate([out_main, out_tail])
    else:
        out_flat = out_main
    return out_flat.reshape(orig_shape)


class PiecewiseLeakyReLU:
    """JAX/Pallas port of spikingjelly PiecewiseLeakyReLU (forward only).

    The PyTorch module's surrogate gradient lives in backward(); only the
    forward pass is implemented here as required.
    """

    def __init__(self, w: float = 1.0, c: float = 0.01, spiking: bool = True):
        self.w = w
        self.c = c
        self.spiking = spiking

    def __call__(self, x: jax.Array) -> jax.Array:
        return piecewise_leaky_relu_forward(x, self.w, self.c, self.spiking)


# ---------------- reference (plain JAX, PyTorch mask formulation) ----------------

def _ref_forward(x, w=1.0, c=0.01, spiking=True):
    if spiking:
        return (x >= 0).astype(x.dtype)
    mask0 = (x < -w).astype(x.dtype)
    mask1 = (x > w).astype(x.dtype)
    mask2 = jnp.ones_like(x) - mask0 - mask1
    if c == 0.0:
        return mask2 * (x / (2 * w) + 0.5) + mask1
    cw = c * w
    return mask0 * (c * x + cw) + mask1 * (c * x + (-cw + 1)) + mask2 * (x / (2 * w) + 0.5)


if __name__ == "__main__":
    key = jax.random.PRNGKey(0)
    k0, k1, k2 = jax.random.split(key, 3)

    # Small NCHW input, exactly chunk-aligned (no tail path, single grid step).
    x = jax.random.normal(k0, (2, 4, 16, 16), dtype=jnp.float32) * 2.0

    mod_spiking = PiecewiseLeakyReLU(w=1.0, c=0.01, spiking=True)
    y_spk = jax.block_until_ready(mod_spiking(x))
    assert y_spk.shape == x.shape and y_spk.dtype == x.dtype
    assert bool(jnp.allclose(y_spk, _ref_forward(x, 1.0, 0.01, True))), "spiking mismatch"

    mod_prim = PiecewiseLeakyReLU(w=1.0, c=0.01, spiking=False)
    y_prim = jax.block_until_ready(mod_prim(x))
    assert bool(jnp.allclose(y_prim, _ref_forward(x, 1.0, 0.01, False), atol=1e-6)), \
        "primitive mismatch"

    # Multi-step grid + masked partial last block: 2*5*16*32 = 10240 elems ->
    # 80 rows; force tile_rows=16 via a small test block -> grid=(5,), last
    # tiles exercise full + partial block streaming.
    x_rag = jax.random.normal(k1, (2, 5, 16, 32), dtype=jnp.float32) * 2.0
    y_rag = jax.block_until_ready(
        piecewise_leaky_relu_forward(x_rag, 1.0, 0.01, False,
                                     block_bytes=16 * _LANES * 4))
    assert bool(jnp.allclose(y_rag, _ref_forward(x_rag, 1.0, 0.01, False), atol=1e-6)), \
        "multi-block primitive mismatch"

    # Odd element count (3*5*7*11 = 1155): kernel runs on the 1024-element
    # aligned prefix, plain-jnp tail -- no full-array pad/slice round-trip.
    x_odd = jax.random.normal(k2, (3, 5, 7, 11), dtype=jnp.float32) * 2.0
    y_odd = jax.block_until_ready(piecewise_leaky_relu_forward(x_odd, 1.0, 0.01, True))
    assert bool(jnp.allclose(y_odd, _ref_forward(x_odd, 1.0, 0.01, True))), \
        "tail spiking mismatch"

    # bf16 input exercises the native low-precision compute path (v6e/v7x).
    x_bf16 = (jax.random.normal(k0, (2, 4, 16, 16), dtype=jnp.float32) * 2.0
              ).astype(jnp.bfloat16)
    y_bf16 = jax.block_until_ready(piecewise_leaky_relu_forward(x_bf16, 1.0, 0.01, False))
    ref_bf16 = _ref_forward(x_bf16.astype(jnp.float32), 1.0, 0.01, False)
    assert bool(jnp.allclose(y_bf16.astype(jnp.float32), ref_bf16, atol=2e-2)), \
        "bf16 primitive mismatch"

    # TODO(synk): backward() surrogate gradient (autograd.Function) is not part of the
    # forward spec and is intentionally not implemented here.
    print("KERNEL_OK")
</pallas_src>

<mosaic_0001>
module attributes {stable_mosaic.version = 11 : i64} {
  func.func @_heaviside_kernel(%arg0: i32, %arg1: memref<16x128xf32, #tpu.memory_space<vmem>>, %arg2: memref<16x128xf32, #tpu.memory_space<vmem>>) attributes {dimension_semantics = [#tpu.dimension_semantics<parallel>], iteration_bounds = array<i64: 1>, scalar_prefetch = 0 : i64, scratch_operands = 0 : i64, tpu.core_type = #tpu.core_type<tc>, window_params = [{transform_indices = @transform_0, window_bounds = array<i64: 16, 128>}, {transform_indices = @transform_1, window_bounds = array<i64: 16, 128>}]} {
    %c0 = arith.constant 0 : index
    %c0_0 = arith.constant 0 : index
    %0 = vector.load %arg1[%c0, %c0_0] : memref<16x128xf32, #tpu.memory_space<vmem>>, vector<16x128xf32>
    %cst = arith.constant 0.000000e+00 : f32
    %1 = vector.broadcast %cst : f32 to vector<16x128xf32>
    %2 = arith.cmpf oge, %0, %1 : vector<16x128xf32>
    %3 = arith.extui %2 : vector<16x128xi1> to vector<16x128xi32>
    %4 = arith.sitofp %3 : vector<16x128xi32> to vector<16x128xf32>
    %c0_1 = arith.constant 0 : index
    %c0_2 = arith.constant 0 : index
    %5 = vector.load %arg2[%c0_1, %c0_2] : memref<16x128xf32, #tpu.memory_space<vmem>>, vector<16x128xf32>
    tpu.vector_store %arg2[%c0_1, %c0_2], %4 {strides = array<i32>} : memref<16x128xf32, #tpu.memory_space<vmem>>, vector<16x128xf32>,
    return
  }
  func.func @transform_0(%arg0: i32) -> (i32, i32) {
    %c0_i32 = arith.constant 0 : i32
    %c0_i32_0 = arith.constant 0 : i32
    return %arg0, %c0_i32 : i32, i32
  }
  func.func @transform_1(%arg0: i32) -> (i32, i32) {
    %c0_i32 = arith.constant 0 : i32
    %c0_i32_0 = arith.constant 0 : i32
    return %arg0, %c0_i32 : i32, i32
  }
}

</mosaic_0001>

<llo_original>
// kernel: tpu_custom_call.1
$region0: #{tpu_custom_call.1}
  #allocation0 [shape = 'u32[]', space=smem, size = 0x4, offset = 0x4, fixed_abs, tag = 'smem constant byte address 0x4 - core index']
  #allocation1 [shape = 'u32[144,128]{1,0:T(1,128)}', space=vmem, size = 0x12000, scoped, tag = 'internal scratch']
  %s0 = inlined_call_operand.hbm [shape: f32[16,128], index: 0, kind: input, shape index: {}]
  %s1 = inlined_call_operand.hbm [shape: f32[16,128], index: 1, kind: output, shape index: {}]
  %s2 = sld [smem:[#allocation0]]
  $region18: #{tpu_custom_call.1} parent=0
    _
  %s4 = ssub.s32 1, %s2
  %s5 = scalar_select 0, %s4, %s2
  $region1: #{tpu_custom_call.1} parent=0
    #allocation2 [shape = 'u8[8192]{0}', space=vmem, size = 0x2000, scoped, tag = 'input window, operand 0, single buffered']
    #allocation3 [shape = 's32[1]{0}', space=sflag, size = 0x4, scoped, tag = 'scoped memory for tpu_custom_call.1']
    #allocation4 [shape = 's32[1]{0}', space=sflag, size = 0x4, scoped, tag = 'scoped memory for tpu_custom_call.1']
    #allocation5 [shape = 'u8[8192]{0}', space=vmem, size = 0x2000, scoped, tag = 'output window, operand 0, single buffered']
    %6 = vsyncpa [#allocation3], 0
    %7 = vsyncpa [#allocation4], 0
    // Predicated region
    $region2: #{tpu_custom_call.1} parent=1 // pred_check
      _
    $region3: #{tpu_custom_call.1} parent=1 // pred_check_branch
      %9 = sbr.rel (0) target = $region5
    $region4: #{tpu_custom_call.1} parent=1 // pred_region
      %s11 = ssub.s32 256, 256
      %12 = vsyncadd [#allocation3], %s11
      %s13 = sshll.u32 [#allocation2], 4
      %s14 = int_to_ptr.vmem [resolvable:$true] %s13
      %19 = dma.hbm_to_vmem [thread:$0]  %s0, 256, %s14, [#allocation3], 128, 128, 8
    $region5: #{tpu_custom_call.1} parent=1 // pred_fallthru
      _
    // Predicated region
    $region6: #{tpu_custom_call.1} parent=1 // pred_check
      _
    $region7: #{tpu_custom_call.1} parent=1 // pred_check_branch
      %21 = sbr.rel (0) target = $region9
    $region8: #{tpu_custom_call.1} parent=1 // pred_region
      %22 = dma.done [#allocation3], 256
    $region9: #{tpu_custom_call.1} parent=1 // pred_fallthru
      _
    %v23 = vld [vmem:[#allocation2] sm:$0xff]
    %v24 = vld [vmem:[#allocation2 + $0x8] sm:$0xff]
    %vm25 = vcmp.ge.f32.partialorder %v23, 0.0
    %vm26 = vcmp.ge.f32.partialorder %v24, 0.0
    %v27 = vsel %vm25, 1, 0
    %v28 = vsel %vm26, 1, 0
    %v29 = vcvt.s32.f32 %v27
    %v30 = vcvt.s32.f32 %v28
    %31 = vst [vmem:[#allocation5] sm:$0xff] %v29
    %32 = vst [vmem:[#allocation5 + $0x8] sm:$0xff] %v30
    // Predicated region
    $region10: #{tpu_custom_call.1} parent=1 // pred_check
      _
    $region11: #{tpu_custom_call.1} parent=1 // pred_check_branch
      %34 = sbr.rel (0) target = $region13
    $region12: #{tpu_custom_call.1} parent=1 // pred_region
      %s36 = ssub.s32 256, 256
      %37 = vsyncadd [#allocation4], %s36
      %s38 = sshll.u32 [#allocation5], 4
      %s39 = int_to_ptr.vmem [resolvable:$true] %s38
      %44 = dma.vmem_to_hbm [thread:$0]  %s39, 256, %s1, [#allocation4], 128, 128, 8
    $region13: #{tpu_custom_call.1} parent=1 // pred_fallthru
      _
    // Predicated region
    $region14: #{tpu_custom_call.1} parent=1 // pred_check
      _
    $region15: #{tpu_custom_call.1} parent=1 // pred_check_branch
      %46 = sbr.rel (0) target = $region17
    $region16: #{tpu_custom_call.1} parent=1 // pred_region
      %47 = dma.done [#allocation4], 256
    $region17: #{tpu_custom_call.1} parent=1 // pred_fallthru
      _
    %48 = vsyncpa [#allocation3], 1
    %49 = vsyncpa [#allocation4], 1

</llo_original>
